<compile_context>
chip_gen: v5e
topology: v5e:2x2
jax: 0.10.0
libtpu: 0.0.40
codegen_flags: <defaults>
</compile_context>

<pallas_src>
import functools

import jax
import jax.numpy as jnp
from jax import lax
from jax.experimental import pallas as pl
from jax.experimental.pallas import tpu as pltpu

_LANE = 128
_SUBLANE = 8
_CHUNK_ROWS = 128   # rows folded per inner-loop step (keeps temps ~64 KiB)


def _cdiv(a, b):
    return -(-a // b)


def _round_down(a, b):
    return (a // b) * b


def _device_kind():
    try:
        return jax.devices()[0].device_kind.lower()
    except Exception:
        return ""


def _num_tensorcores(kind):
    # v7x exposes 2 TensorCores per chip to one Pallas call (leading
    # "parallel" grid axis is core-sharded); v5e/v6e expose a single core.
    return 2 if "7" in kind else 1


def _block_byte_budget(kind):
    # Per-input, per-pipeline-buffer block size.  2 inputs x 2 buffers must
    # stay well inside the default scoped-VMEM limit (v5e: 16 MiB,
    # v6e / v7x: 32 MiB) with headroom for internal scratch.
    if ("v6" in kind) or ("7" in kind):
        return 4 * 1024 * 1024
    return 2 * 1024 * 1024


def _ce_kernel(yt_ref, yp_ref, out_ref, acc_ref, *, smooth, steps, tile_rows,
               chunk_rows, num_chunks, valid_rows, emit_mask):
    i = pl.program_id(0)
    j = pl.program_id(1)

    @pl.when(j == 0)
    def _():
        acc_ref[...] = jnp.zeros_like(acc_ref)

    # Logical (unclamped) block index.  The index_map clamps the DMA so fully
    # out-of-range blocks simply re-read the last valid block; the mask below
    # zeroes their contribution.
    b_log = i * steps + j
    row0 = b_log * tile_rows

    def accumulate(masked):
        def fold(yt_v, yp_v, grow0, acc):
            yt = yt_v.astype(jnp.float32)
            yp = yp_v.astype(jnp.float32)
            if masked:
                gr = grow0 + lax.broadcasted_iota(
                    jnp.int32, (chunk_rows, _LANE), 0)
                keep = gr < valid_rows
                # Gate BEFORE the log: out-of-bounds rows may hold garbage
                # (negatives / NaN) and NaN * 0 would poison the sum.
                yt = jnp.where(keep, yt, 0.0)
                yp = jnp.where(keep, yp, 1.0)
            prod = yt * jnp.log(yp + smooth)
            # Tile-aligned fold onto the (8, 128) per-lane accumulator:
            # pure vreg adds on the VPU, no cross-lane (XLU) work.
            return acc + prod.reshape(
                chunk_rows // _SUBLANE, _SUBLANE, _LANE).sum(axis=0)

        if num_chunks == 1:
            acc_ref[...] = fold(yt_ref[...], yp_ref[...], row0, acc_ref[...])
        else:
            def body(c, acc):
                off = pl.multiple_of(c * chunk_rows, chunk_rows)
                return fold(yt_ref[pl.ds(off, chunk_rows), :],
                            yp_ref[pl.ds(off, chunk_rows), :],
                            row0 + c * chunk_rows, acc)
            acc_ref[...] = lax.fori_loop(0, num_chunks, body, acc_ref[...])

    if emit_mask:
        needs_mask = (b_log + 1) * tile_rows > valid_rows

        @pl.when(needs_mask)
        def _():
            accumulate(True)

        @pl.when(jnp.logical_not(needs_mask))
        def _():
            accumulate(False)
    else:
        accumulate(False)

    @pl.when(j == pl.num_programs(1) - 1)
    def _():
        out_ref[...] = acc_ref[...]


def crossentry_loss(y_true, y_pred, *, xla_fastpath_elements=0):
    """JAX/Pallas equivalent of crossentry.forward: -mean(y_true*log(y_pred+1e-6))."""
    smooth = 1e-6

    def _prep(x):
        x = jnp.ravel(x)  # free reshape; dtype kept native for bf16/f16/f32
        if x.dtype not in (jnp.float32, jnp.bfloat16, jnp.float16):
            x = x.astype(jnp.float32)
        return x

    yt = _prep(y_true)
    yp = _prep(y_pred)
    n = yt.shape[0]
    assert yp.shape[0] == n, "y_true and y_pred must have the same size"

    # Sublane granule of the block's second-minor dim: 8 for 32-bit, 16 for 16-bit.
    granule = 16 if (yt.dtype.itemsize < 4 or yp.dtype.itemsize < 4) else 8
    rows = _cdiv(n, _LANE)

    if n <= xla_fastpath_elements or rows < granule:
        # Tiny inputs: kernel dispatch + grid setup dominate; pure XLA is faster.
        return -jnp.mean(yt.astype(jnp.float32)
                         * jnp.log(yp.astype(jnp.float32) + smooth))

    # Only sub-row padding (to a 128-lane multiple) may be needed; the ragged
    # row tail is masked inside the kernel instead of padded in HBM.
    # TODO(synk): this rare (<128-element) pad still copies both inputs once.
    pad = rows * _LANE - n
    if pad:
        yt = jnp.pad(yt, (0, pad))                        # y_true = 0 -> exact 0 term
        yp = jnp.pad(yp, (0, pad), constant_values=1.0)   # keeps log finite
    yt2 = yt.reshape(rows, _LANE)
    yp2 = yp.reshape(rows, _LANE)

    kind = _device_kind()
    ncores = _num_tensorcores(kind)
    max_itemsize = max(yt.dtype.itemsize, yp.dtype.itemsize)
    max_tile_rows = _block_byte_budget(kind) // (_LANE * max_itemsize)

    rows_per_core = _cdiv(rows, ncores)
    tile_rows = min(max_tile_rows,
                    max(granule, _round_down(rows_per_core, granule)))
    if tile_rows >= _CHUNK_ROWS:
        tile_rows = _round_down(tile_rows, _CHUNK_ROWS)
        chunk_rows = _CHUNK_ROWS
    else:
        chunk_rows = tile_rows
    num_chunks = tile_rows // chunk_rows

    steps = _cdiv(rows, ncores * tile_rows)
    coverage = ncores * steps * tile_rows
    emit_mask = coverage != rows              # static: clean shapes skip the mask code
    last_block = _cdiv(rows, tile_rows) - 1   # for clamping fully-OOB block indices

    def index_map(i, j):
        return (jnp.minimum(i * steps + j, last_block), 0)

    in_spec = pl.BlockSpec((tile_rows, _LANE), index_map)

    kernel = functools.partial(
        _ce_kernel, smooth=smooth, steps=steps, tile_rows=tile_rows,
        chunk_rows=chunk_rows, num_chunks=num_chunks, valid_rows=rows,
        emit_mask=emit_mask)

    partials = pl.pallas_call(
        kernel,
        out_shape=jax.ShapeDtypeStruct((ncores * _SUBLANE, _LANE), jnp.float32),
        grid_spec=pltpu.PrefetchScalarGridSpec(
            num_scalar_prefetch=0,
            grid=(ncores, steps),
            in_specs=[in_spec, in_spec],
            out_specs=pl.BlockSpec((_SUBLANE, _LANE), lambda i, j: (i, 0)),
            scratch_shapes=[pltpu.VMEM((_SUBLANE, _LANE), jnp.float32)],
        ),
        compiler_params=pltpu.CompilerParams(
            dimension_semantics=("parallel", "arbitrary"),
        ),
    )(yt2, yp2)

    # One tiny cross-lane reduction + the mean's divide, done once in XLA.
    return -jnp.sum(partials) / n


def _reference_loss(y_true, y_pred):
    """Pure-JAX reference mirroring the PyTorch forward exactly."""
    smooth = 1e-6
    return -jnp.mean(y_true * jnp.log(y_pred + smooth))


if __name__ == "__main__":
    key = jax.random.PRNGKey(0)
    k1, k2, k3, k4 = jax.random.split(key, 4)

    loss_fn = jax.jit(crossentry_loss)

    # Test 1: the module's nominal small shape, float32.
    shape = (2, 4, 16, 16)
    y_true = jax.random.bernoulli(k1, p=0.5, shape=shape).astype(jnp.float32)
    y_pred = jax.random.uniform(k2, shape, jnp.float32, 0.05, 0.95)
    loss = jax.block_until_ready(loss_fn(y_true, y_pred))
    ref = _reference_loss(y_true, y_pred)
    assert jnp.allclose(loss, ref, rtol=1e-5, atol=1e-6), (loss, ref)

    # Test 2: ragged size (n % 128 != 0, rows % tile != 0) + bf16 inputs,
    # exercising the in-kernel tail mask and the native-dtype streaming path.
    shape2 = (3, 5, 37, 21)
    yt_b = jax.random.bernoulli(k3, p=0.3, shape=shape2).astype(jnp.bfloat16)
    yp_b = jax.random.uniform(k4, shape2, jnp.float32, 0.05, 0.95).astype(jnp.bfloat16)
    loss2 = jax.block_until_ready(loss_fn(yt_b, yp_b))
    ref2 = _reference_loss(yt_b.astype(jnp.float32), yp_b.astype(jnp.float32))
    assert jnp.allclose(loss2, ref2, rtol=1e-4, atol=1e-4), (loss2, ref2)

    print("KERNEL_OK")
</pallas_src>

<mosaic_0001>
module attributes {stable_mosaic.version = 11 : i64} {
  func.func @_ce_kernel(%arg0: i32, %arg1: i32, %arg2: memref<16x128xf32, #tpu.memory_space<vmem>>, %arg3: memref<16x128xf32, #tpu.memory_space<vmem>>, %arg4: memref<8x128xf32, #tpu.memory_space<vmem>>, %arg5: memref<8x128xf32, #tpu.memory_space<vmem>>) attributes {dimension_semantics = [#tpu.dimension_semantics<parallel>, #tpu.dimension_semantics<arbitrary>], iteration_bounds = array<i64: 1, 1>, scalar_prefetch = 0 : i64, scratch_operands = 1 : i64, tpu.core_type = #tpu.core_type<tc>, window_params = [{transform_indices = @transform_0, window_bounds = array<i64: 16, 128>}, {transform_indices = @transform_1, window_bounds = array<i64: 16, 128>}, {transform_indices = @transform_2, window_bounds = array<i64: 8, 128>}]} {
    %c0_i32 = arith.constant 0 : i32
    %0 = arith.cmpi eq, %arg1, %c0_i32 : i32
    %1 = arith.extui %0 : i1 to i32
    %c0_i32_0 = arith.constant 0 : i32
    %2 = arith.cmpi ne, %1, %c0_i32_0 : i32
    scf.if %2 {
      %cst_11 = arith.constant 0.000000e+00 : f32
      %17 = vector.broadcast %cst_11 : f32 to vector<8x128xf32>
      %c0_12 = arith.constant 0 : index
      %c0_13 = arith.constant 0 : index
      %18 = vector.load %arg5[%c0_12, %c0_13] : memref<8x128xf32, #tpu.memory_space<vmem>>, vector<8x128xf32>
      tpu.vector_store %arg5[%c0_12, %c0_13], %17 {strides = array<i32>} : memref<8x128xf32, #tpu.memory_space<vmem>>, vector<8x128xf32>,
    } else {
    }
    %c0 = arith.constant 0 : index
    %c0_1 = arith.constant 0 : index
    %3 = vector.load %arg2[%c0, %c0_1] : memref<16x128xf32, #tpu.memory_space<vmem>>, vector<16x128xf32>
    %c0_2 = arith.constant 0 : index
    %c0_3 = arith.constant 0 : index
    %4 = vector.load %arg3[%c0_2, %c0_3] : memref<16x128xf32, #tpu.memory_space<vmem>>, vector<16x128xf32>
    %c0_4 = arith.constant 0 : index
    %c0_5 = arith.constant 0 : index
    %5 = vector.load %arg5[%c0_4, %c0_5] : memref<8x128xf32, #tpu.memory_space<vmem>>, vector<8x128xf32>
    %cst = arith.constant 9.99999997E-7 : f32
    %6 = vector.broadcast %cst : f32 to vector<16x128xf32>
    %7 = arith.addf %4, %6 : vector<16x128xf32>
    %8 = math.log %7 : vector<16x128xf32>
    %9 = arith.mulf %3, %8 : vector<16x128xf32>
    %10 = vector.shape_cast %9 : vector<16x128xf32> to vector<2x8x128xf32>
    %cst_6 = arith.constant dense<0.000000e+00> : vector<8x128xf32>
    %11 = vector.multi_reduction <add>, %10, %cst_6 [0] : vector<2x8x128xf32> to vector<8x128xf32>
    %12 = arith.addf %5, %11 : vector<8x128xf32>
    %c0_7 = arith.constant 0 : index
    %c0_8 = arith.constant 0 : index
    %13 = vector.load %arg5[%c0_7, %c0_8] : memref<8x128xf32, #tpu.memory_space<vmem>>, vector<8x128xf32>
    tpu.vector_store %arg5[%c0_7, %c0_8], %12 {strides = array<i32>} : memref<8x128xf32, #tpu.memory_space<vmem>>, vector<8x128xf32>,
    %c0_i32_9 = arith.constant 0 : i32
    %14 = arith.cmpi eq, %arg1, %c0_i32_9 : i32
    %15 = arith.extui %14 : i1 to i32
    %c0_i32_10 = arith.constant 0 : i32
    %16 = arith.cmpi ne, %15, %c0_i32_10 : i32
    scf.if %16 {
      %c0_11 = arith.constant 0 : index
      %c0_12 = arith.constant 0 : index
      %17 = vector.load %arg5[%c0_11, %c0_12] : memref<8x128xf32, #tpu.memory_space<vmem>>, vector<8x128xf32>
      %c0_13 = arith.constant 0 : index
      %c0_14 = arith.constant 0 : index
      %18 = vector.load %arg4[%c0_13, %c0_14] : memref<8x128xf32, #tpu.memory_space<vmem>>, vector<8x128xf32>
      tpu.vector_store %arg4[%c0_13, %c0_14], %17 {strides = array<i32>} : memref<8x128xf32, #tpu.memory_space<vmem>>, vector<8x128xf32>,
    } else {
    }
    return
  }
  func.func @transform_0(%arg0: i32, %arg1: i32) -> (i32, i32) {
    %c1_i32 = arith.constant 1 : i32
    %0 = arith.muli %arg0, %c1_i32 : i32
    %1 = arith.addi %0, %arg1 : i32
    %c0_i32 = arith.constant 0 : i32
    %2 = arith.minsi %1, %c0_i32 : i32
    %c0_i32_0 = arith.constant 0 : i32
    %c0_i32_1 = arith.constant 0 : i32
    return %2, %c0_i32_0 : i32, i32
  }
  func.func @transform_1(%arg0: i32, %arg1: i32) -> (i32, i32) {
    %c1_i32 = arith.constant 1 : i32
    %0 = arith.muli %arg0, %c1_i32 : i32
    %1 = arith.addi %0, %arg1 : i32
    %c0_i32 = arith.constant 0 : i32
    %2 = arith.minsi %1, %c0_i32 : i32
    %c0_i32_0 = arith.constant 0 : i32
    %c0_i32_1 = arith.constant 0 : i32
    return %2, %c0_i32_0 : i32, i32
  }
  func.func @transform_2(%arg0: i32, %arg1: i32) -> (i32, i32) {
    %c0_i32 = arith.constant 0 : i32
    %c0_i32_0 = arith.constant 0 : i32
    return %arg0, %c0_i32 : i32, i32
  }
}

</mosaic_0001>

<llo_original>
// kernel: crossentry_loss.1
$region0: #{crossentry_loss.1}
  #allocation0 [shape = 'u32[]', space=smem, size = 0x4, offset = 0x4, fixed_abs, tag = 'smem constant byte address 0x4 - core index']
  #allocation1 [shape = 'u32[72,128]{1,0:T(1,128)}', space=vmem, size = 0x9000, scoped, tag = 'internal scratch']
  #allocation2 [shape = 'f32[8,128]{1,0:T(8,128)}', space=vmem, size = 0x1000, scoped, tag = 'scratch operand']
  %s0 = inlined_call_operand.vmem [shape: f32[16,128], index: 0, kind: input, shape index: {}]
  %s1 = inlined_call_operand.vmem [shape: f32[16,128], index: 1, kind: input, shape index: {}]
  %s2 = inlined_call_operand.vmem [shape: f32[8,128], index: 2, kind: output, shape index: {}]
  %s3 = sld [smem:[#allocation0]]
  $region26: #{crossentry_loss.1} parent=0
    _
  %s5 = ssub.s32 1, %s3
  %s6 = scalar_select 0, %s5, %s3
  // Predicated region
  $region2: #{crossentry_loss.1} parent=0 // pred_check
    _
  $region3: #{crossentry_loss.1} parent=0 // pred_check_branch
    %8 = sbr.rel (0) target = $region5
  $region4: #{crossentry_loss.1} parent=0 // pred_region
    %s9 = sadd.s32 0, 0
    %p10 = scmp.lt.s32.totalorder %s9, 0
    %s11 = scalar_select %p10, %s9, 0
    %s12 = smul.u32 2, %s11
    %p13 = scmp.lt.s32.totalorder %s12, 1
    %s14 = scalar_select %p13, %s12, 1
    %s15 = smul.addr %s14, 8
    %s16 = scalar_lea.vmem %s0, %s15
    %s17 = sadd.s32 0, 0
    %p18 = scmp.lt.s32.totalorder %s17, 0
    %s19 = scalar_select %p18, %s17, 0
    %s20 = smul.u32 2, %s19
  $region5: #{crossentry_loss.1} parent=0 // pred_fallthru
    _
  // Predicated region
  $region6: #{crossentry_loss.1} parent=0 // pred_check
    _
  $region7: #{crossentry_loss.1} parent=0 // pred_check_branch
    %22 = sbr.rel (0) target = $region9
  $region8: #{crossentry_loss.1} parent=0 // pred_region
    %s23 = sadd.s32 0, 0
    %p24 = scmp.lt.s32.totalorder %s23, 0
    %s25 = scalar_select %p24, %s23, 0
    %s26 = smul.u32 2, %s25
    %p27 = scmp.lt.s32.totalorder %s26, 1
    %s28 = scalar_select %p27, %s26, 1
    %s29 = smul.addr %s28, 8
    %s30 = scalar_lea.vmem %s1, %s29
    %s31 = sadd.s32 0, 0
    %p32 = scmp.lt.s32.totalorder %s31, 0
    %s33 = scalar_select %p32, %s31, 0
    %s34 = smul.u32 2, %s33
  $region9: #{crossentry_loss.1} parent=0 // pred_fallthru
    _
  %s35 = sadd.s32 0, 0
  %p36 = scmp.lt.s32.totalorder %s35, 0
  %s37 = scalar_select %p36, %s35, 0
  %s38 = smul.u32 2, %s37
  %p39 = scmp.lt.s32.totalorder %s38, 1
  %s40 = scalar_select %p39, %s38, 1
  %s41 = smul.addr %s40, 8
  %s42 = scalar_lea.vmem %s0, %s41
  %s43 = sadd.s32 0, 0
  %p44 = scmp.lt.s32.totalorder %s43, 0
  %s45 = scalar_select %p44, %s43, 0
  %s46 = smul.u32 2, %s45
  %p47 = scmp.lt.s32.totalorder %s46, 1
  %s48 = scalar_select %p47, %s46, 1
  %s49 = smul.addr %s48, 8
  %s50 = scalar_lea.vmem %s1, %s49
  %s51 = sadd.s32 0, 0
  %p52 = scmp.lt.s32.totalorder %s51, 0
  %s53 = scalar_select %p52, %s51, 0
  %s54 = smul.u32 2, %s53
  %p55 = scmp.lt.s32.totalorder %s54, 1
  %s56 = scalar_select %p55, %s54, 1
  %s57 = smul.addr %s56, 8
  %s58 = scalar_lea.vmem %s0, %s57
  %s59 = sadd.s32 0, 0
  %p60 = scmp.lt.s32.totalorder %s59, 0
  %s61 = scalar_select %p60, %s59, 0
  %s62 = smul.u32 2, %s61
  %s63 = sadd.s32 0, 0
  %p64 = scmp.lt.s32.totalorder %s63, 0
  %s65 = scalar_select %p64, %s63, 0
  %s66 = smul.u32 2, %s65
  %p67 = scmp.lt.s32.totalorder %s66, 1
  %s68 = scalar_select %p67, %s66, 1
  %s69 = smul.addr %s68, 8
  %s70 = scalar_lea.vmem %s1, %s69
  %s71 = sadd.s32 0, 0
  %p72 = scmp.lt.s32.totalorder %s71, 0
  %s73 = scalar_select %p72, %s71, 0
  %s74 = smul.u32 2, %s73
  %p75 = scmp.eq.s32.totalorder 0, 0
  // Predicated region
  $region10: #{crossentry_loss.1} parent=0 // pred_check
    %p76 = pneg %p75
  $region11: #{crossentry_loss.1} parent=0 // pred_check_branch
    %78 = sbr.rel (%p76) target = $region13
  $region12: #{crossentry_loss.1} parent=0 // pred_region
    %79 = vst [vmem:[#allocation2] sm:$0xff] 0.0
  $region13: #{crossentry_loss.1} parent=0 // pred_fallthru
    _
  %v80 = vld [vmem:[%s58] sm:$0xff]
  %v81 = vld [vmem:[%s58 + $0x8] sm:$0xff]
  %v82 = vld [vmem:[%s70] sm:$0xff]
  %v83 = vld [vmem:[%s70 + $0x8] sm:$0xff]
  %v84 = vld [vmem:[#allocation2] sm:$0xff]
  %v85 = vadd.f32 %v82, 1e-06
  %v86 = vadd.f32 %v83, 1e-06
  %v87 = vlog2.pop %v85
  %v88 = vmul.f32 %v87, 0.6931472
  %v89 = vlog2.pop %v86
  %v90 = vmul.f32 %v89, 0.6931472
  %v91 = vmul.f32 %v80, %v88
  %v92 = vmul.f32 %v81, %v90
  %v93 = vadd.f32 %v91, %v92
  %v94 = vadd.f32 %v84, %v93
  %95 = vst [vmem:[#allocation2] sm:$0xff] %v94
  // Predicated region
  $region14: #{crossentry_loss.1} parent=0 // pred_check
    %p96 = pneg %p75
  $region15: #{crossentry_loss.1} parent=0 // pred_check_branch
    %98 = sbr.rel (%p96) target = $region17
  $region16: #{crossentry_loss.1} parent=0 // pred_region
    %v99 = vld [vmem:[#allocation2] sm:$0xff]
    %100 = vst [vmem:[%s2] sm:$0xff] %v99
  $region17: #{crossentry_loss.1} parent=0 // pred_fallthru
    _
  // Predicated region
  $region18: #{crossentry_loss.1} parent=0 // pred_check
    _
  $region19: #{crossentry_loss.1} parent=0 // pred_check_branch
    %102 = sbr.rel (0) target = $region21
  $region20: #{crossentry_loss.1} parent=0 // pred_region
    _
  $region21: #{crossentry_loss.1} parent=0 // pred_fallthru
    _
  // Predicated region
  $region22: #{crossentry_loss.1} parent=0 // pred_check
    _
  $region23: #{crossentry_loss.1} parent=0 // pred_check_branch
    %104 = sbr.rel (0) target = $region25
  $region24: #{crossentry_loss.1} parent=0 // pred_region
    _
  $region25: #{crossentry_loss.1} parent=0 // pred_fallthru
    _

</llo_original>
